<compile_context>
chip_gen: v5e
topology: v5e:2x2
jax: 0.10.0
libtpu: 0.0.40
codegen_flags: <defaults>
</compile_context>

<pallas_src>
import math

import jax
import jax.numpy as jnp
from jax.experimental import pallas as pl
from jax.experimental.pallas import tpu as pltpu


def _gelu_exact(x):
    # torch.nn.GELU() default (approximate='none'): 0.5*x*(1+erf(x/sqrt(2)))
    return 0.5 * x * (1.0 + jax.lax.erf(x * (1.0 / math.sqrt(2.0))))


# ------------------------- fused Pallas kernel -------------------------

def moe_fused_kernel(x_ref, wfc_ref, bfc_ref, cwexp_ref, wproj_ref,
                     cw_ref, bproj_ref, o_ref):
    # x:(TM,C)  wfc:(C,E*H)  bfc:(1,E*H)  cwexp:(TM,E*H)
    # wproj:(E*H,Cp)  cw:(TM,E)  bproj:(E,Cp)  out:(TM,Cp)
    h = jnp.dot(x_ref[...], wfc_ref[...],
                preferred_element_type=jnp.float32)          # (TM, E*H) f32
    h = _gelu_exact(h + bfc_ref[...])                        # f32 GELU
    h = (h * cwexp_ref[...]).astype(wproj_ref.dtype)         # per-expert combine
    y = jnp.dot(h, wproj_ref[...],
                preferred_element_type=jnp.float32)          # (TM, Cp) f32
    y = y + jnp.dot(cw_ref[...], bproj_ref[...],
                    preferred_element_type=jnp.float32)      # combined proj bias
    o_ref[...] = y.astype(o_ref.dtype)


# ------------------------- wrapper -------------------------

def _pick_tm(n):
    # token-tile size: multiple of 8, prefer >= 2 tiles (v7x megacore), cap 256
    for tm in (256, 128, 64, 32, 16, 8):
        if n % tm == 0 and n // tm >= 2:
            return tm
    return n


def moe_forward(x, params, *, n_experts, n_shared, n_experts_per_token,
                compute_dtype=jnp.float32):
    B, T, C = x.shape
    N = B * T
    E = n_experts
    S = n_shared
    R = E - S
    K = n_experts_per_token - S
    H = params["w_fc"].shape[2]
    EH = E * H
    Cp = ((C + 127) // 128) * 128          # lane-dense output width

    xf = x.reshape(N, C)
    xf32 = xf.astype(jnp.float32)

    # --- routing glue (tiny) in plain XLA, f32 for deterministic top-k ---
    logits = xf32 @ params["gate_w"].astype(jnp.float32)              # (N, R)
    selection_logits = logits + params["lb_bias"][None, :]
    topk_idx = jax.lax.top_k(selection_logits, K)[1]                  # (N, K)
    probs = jax.nn.softmax(logits, axis=-1)                           # (N, R)
    topk_w = jnp.take_along_axis(probs, topk_idx, axis=-1)            # (N, K)
    cw_routed = jnp.sum(
        jax.nn.one_hot(topk_idx, R, dtype=jnp.float32) * topk_w[..., None],
        axis=1)                                                       # (N, R)
    combine = jnp.concatenate(
        [jnp.ones((N, S), jnp.float32), cw_routed], axis=1)           # (N, E)
    cw_exp = jnp.repeat(combine, H, axis=1)                           # (N, E*H)

    # --- stack all experts along lanes (a real model would store this layout) ---
    wfc_all = jnp.transpose(params["w_fc"], (1, 0, 2)).reshape(C, EH)
    wfc_all = wfc_all.astype(compute_dtype)                           # (C, E*H)
    bfc_all = params["b_fc"].reshape(1, EH).astype(jnp.float32)       # (1, E*H)
    wproj_all = params["w_proj"].reshape(EH, C).astype(compute_dtype) # (E*H, C)
    bproj_all = params["b_proj"].reshape(E, C).astype(jnp.float32)    # (E, C)
    if Cp != C:  # pad projection output dim -> unmasked 128-lane stores
        wproj_all = jnp.pad(wproj_all, ((0, 0), (0, Cp - C)))
        bproj_all = jnp.pad(bproj_all, ((0, 0), (0, Cp - C)))

    xc = xf.astype(compute_dtype)
    TM = _pick_tm(N)

    out = pl.pallas_call(
        moe_fused_kernel,
        out_shape=jax.ShapeDtypeStruct((N, Cp), x.dtype),
        grid_spec=pltpu.PrefetchScalarGridSpec(
            num_scalar_prefetch=0,
            grid=(N // TM,),
            in_specs=[
                pl.BlockSpec((TM, C), lambda i: (i, 0)),    # x tile
                pl.BlockSpec((C, EH), lambda i: (0, 0)),    # W_fc (resident)
                pl.BlockSpec((1, EH), lambda i: (0, 0)),    # b_fc (resident)
                pl.BlockSpec((TM, EH), lambda i: (i, 0)),   # combine expanded
                pl.BlockSpec((EH, Cp), lambda i: (0, 0)),   # W_proj (resident)
                pl.BlockSpec((TM, E), lambda i: (i, 0)),    # combine (N, E)
                pl.BlockSpec((E, Cp), lambda i: (0, 0)),    # b_proj (resident)
            ],
            out_specs=pl.BlockSpec((TM, Cp), lambda i: (i, 0))),
        compiler_params=pltpu.CompilerParams(
            dimension_semantics=("parallel",),
            vmem_limit_bytes=32 * 1024 * 1024),
    )(xc, wfc_all, bfc_all, cw_exp, wproj_all, combine, bproj_all)

    return out[:, :C].reshape(B, T, C), None


# ------------------------- pure-JAX reference -------------------------

def moe_reference(x, params, *, n_experts, n_shared, n_experts_per_token):
    B, T, C = x.shape
    N = B * T
    E, S = n_experts, n_shared
    R = E - S
    K = n_experts_per_token - S
    xf = x.reshape(N, C).astype(jnp.float32)

    def mlp(e, v):
        h = v @ params["w_fc"][e] + params["b_fc"][e]
        h = _gelu_exact(h)
        return h @ params["w_proj"][e] + params["b_proj"][e]

    shared = jnp.zeros_like(xf)
    for e in range(S):
        shared = shared + mlp(e, xf)

    logits = xf @ params["gate_w"]
    sel = logits + params["lb_bias"][None, :]
    idx = jax.lax.top_k(sel, K)[1]
    probs = jax.nn.softmax(logits, axis=-1)
    w = jnp.take_along_axis(probs, idx, axis=-1)
    cw = jnp.sum(jax.nn.one_hot(idx, R, dtype=jnp.float32) * w[..., None], axis=1)

    routed = jnp.zeros_like(xf)
    for r in range(R):
        routed = routed + cw[:, r:r + 1] * mlp(S + r, xf)

    return (shared + routed).reshape(B, T, C)


# ------------------------- main -------------------------

if __name__ == "__main__":
    key = jax.random.PRNGKey(0)
    # config: n_embd=32, mlp_expansion_factor=2, n_experts=8, n_shared_experts=2,
    #         n_experts_per_token=4, bias=True, dropout=0.0
    B, T, C = 2, 8, 32
    n_experts, n_shared, n_experts_per_token = 8, 2, 4
    H = int(C * 2.0)
    R = n_experts - n_shared

    ks = jax.random.split(key, 6)
    x = jax.random.normal(ks[0], (B, T, C), jnp.float32)
    params = {
        "gate_w": 0.5 * jax.random.normal(ks[1], (C, R), jnp.float32),      # gate.weight.T
        "lb_bias": jnp.zeros((R,), jnp.float32),                            # load_balancing_bias
        "w_fc": 0.1 * jax.random.normal(ks[2], (n_experts, C, H), jnp.float32),
        "b_fc": 0.1 * jax.random.normal(ks[3], (n_experts, 1, H), jnp.float32),
        "w_proj": 0.1 * jax.random.normal(ks[4], (n_experts, H, C), jnp.float32),
        "b_proj": 0.1 * jax.random.normal(ks[5], (n_experts, 1, C), jnp.float32),
    }

    fwd = jax.jit(moe_forward,
                  static_argnames=("n_experts", "n_shared",
                                   "n_experts_per_token", "compute_dtype"))

    # f32 compute path, tight check against the pure-JAX reference.
    out, aux = fwd(x, params, n_experts=n_experts, n_shared=n_shared,
                   n_experts_per_token=n_experts_per_token,
                   compute_dtype=jnp.float32)
    out = jax.block_until_ready(out)

    ref = moe_reference(x, params, n_experts=n_experts, n_shared=n_shared,
                        n_experts_per_token=n_experts_per_token)

    assert out.shape == (B, T, C)
    assert aux is None
    assert jnp.allclose(out, ref, atol=1e-4, rtol=1e-4), float(
        jnp.max(jnp.abs(out - ref)))

    # bf16 compute path (recommended for v6e/v7x MXUs), f32 accumulation;
    # looser tolerance vs the f32 reference as noted in the review.
    out_bf16, _ = fwd(x, params, n_experts=n_experts, n_shared=n_shared,
                      n_experts_per_token=n_experts_per_token,
                      compute_dtype=jnp.bfloat16)
    out_bf16 = jax.block_until_ready(out_bf16)
    assert jnp.allclose(out_bf16.astype(jnp.float32), ref,
                        atol=1e-1, rtol=1e-1), float(
        jnp.max(jnp.abs(out_bf16.astype(jnp.float32) - ref)))

    print("KERNEL_OK")
</pallas_src>

<mosaic_0001>
module attributes {stable_mosaic.version = 11 : i64} {
  func.func @moe_fused_kernel(%arg0: i32, %arg1: memref<8x32xf32, #tpu.memory_space<vmem>>, %arg2: memref<32x512xf32, #tpu.memory_space<vmem>>, %arg3: memref<1x512xf32, #tpu.memory_space<vmem>>, %arg4: memref<8x512xf32, #tpu.memory_space<vmem>>, %arg5: memref<512x128xf32, #tpu.memory_space<vmem>>, %arg6: memref<8x8xf32, #tpu.memory_space<vmem>>, %arg7: memref<8x128xf32, #tpu.memory_space<vmem>>, %arg8: memref<8x128xf32, #tpu.memory_space<vmem>>) attributes {dimension_semantics = [#tpu.dimension_semantics<parallel>], iteration_bounds = array<i64: 2>, scalar_prefetch = 0 : i64, scratch_operands = 0 : i64, tpu.core_type = #tpu.core_type<tc>, window_params = [{transform_indices = @transform_0, window_bounds = array<i64: 8, 32>}, {pipeline_mode = #tpu.pipeline_mode<synchronous>, transform_indices = @transform_1, window_bounds = array<i64: 32, 512>}, {pipeline_mode = #tpu.pipeline_mode<synchronous>, transform_indices = @transform_2, window_bounds = array<i64: 1, 512>}, {transform_indices = @transform_3, window_bounds = array<i64: 8, 512>}, {pipeline_mode = #tpu.pipeline_mode<synchronous>, transform_indices = @transform_4, window_bounds = array<i64: 512, 128>}, {transform_indices = @transform_5, window_bounds = array<i64: 8, 8>}, {pipeline_mode = #tpu.pipeline_mode<synchronous>, transform_indices = @transform_6, window_bounds = array<i64: 8, 128>}, {transform_indices = @transform_7, window_bounds = array<i64: 8, 128>}]} {
    %c0 = arith.constant 0 : index
    %c0_0 = arith.constant 0 : index
    %0 = vector.load %arg1[%c0, %c0_0] : memref<8x32xf32, #tpu.memory_space<vmem>>, vector<8x32xf32>
    %c0_1 = arith.constant 0 : index
    %c0_2 = arith.constant 0 : index
    %1 = vector.load %arg2[%c0_1, %c0_2] : memref<32x512xf32, #tpu.memory_space<vmem>>, vector<32x512xf32>
    %cst = arith.constant dense<0.000000e+00> : vector<8x512xf32>
    %2 = tpu.matmul %0, %1, %cst {dimension_numbers = #tpu.dot_dimension_numbers<[1], [0], [0], [1], [0, 0, 1, 1], [], []>} : vector<8x32xf32>, vector<32x512xf32>, vector<8x512xf32> -> vector<8x512xf32>
    %c0_3 = arith.constant 0 : index
    %c0_4 = arith.constant 0 : index
    %3 = vector.load %arg3[%c0_3, %c0_4] : memref<1x512xf32, #tpu.memory_space<vmem>>, vector<1x512xf32>
    %4 = vector.broadcast %3 : vector<1x512xf32> to vector<8x512xf32>
    %5 = arith.addf %2, %4 : vector<8x512xf32>
    %cst_5 = arith.constant 5.000000e-01 : f32
    %6 = vector.broadcast %cst_5 : f32 to vector<8x512xf32>
    %7 = arith.mulf %6, %5 : vector<8x512xf32>
    %cst_6 = arith.constant 0.707106769 : f32
    %8 = vector.broadcast %cst_6 : f32 to vector<8x512xf32>
    %9 = arith.mulf %5, %8 : vector<8x512xf32>
    %10 = math.erf %9 : vector<8x512xf32>
    %cst_7 = arith.constant 1.000000e+00 : f32
    %11 = vector.broadcast %cst_7 : f32 to vector<8x512xf32>
    %12 = arith.addf %11, %10 : vector<8x512xf32>
    %13 = arith.mulf %7, %12 : vector<8x512xf32>
    %c0_8 = arith.constant 0 : index
    %c0_9 = arith.constant 0 : index
    %14 = vector.load %arg4[%c0_8, %c0_9] : memref<8x512xf32, #tpu.memory_space<vmem>>, vector<8x512xf32>
    %15 = arith.mulf %13, %14 : vector<8x512xf32>
    %c0_10 = arith.constant 0 : index
    %c0_11 = arith.constant 0 : index
    %16 = vector.load %arg5[%c0_10, %c0_11] : memref<512x128xf32, #tpu.memory_space<vmem>>, vector<512x128xf32>
    %cst_12 = arith.constant dense<0.000000e+00> : vector<8x128xf32>
    %17 = tpu.matmul %15, %16, %cst_12 {dimension_numbers = #tpu.dot_dimension_numbers<[1], [0], [0], [1], [0, 0, 1, 1], [], []>} : vector<8x512xf32>, vector<512x128xf32>, vector<8x128xf32> -> vector<8x128xf32>
    %c0_13 = arith.constant 0 : index
    %c0_14 = arith.constant 0 : index
    %18 = vector.load %arg6[%c0_13, %c0_14] : memref<8x8xf32, #tpu.memory_space<vmem>>, vector<8x8xf32>
    %c0_15 = arith.constant 0 : index
    %c0_16 = arith.constant 0 : index
    %19 = vector.load %arg7[%c0_15, %c0_16] : memref<8x128xf32, #tpu.memory_space<vmem>>, vector<8x128xf32>
    %cst_17 = arith.constant dense<0.000000e+00> : vector<8x128xf32>
    %20 = tpu.matmul %18, %19, %cst_17 {dimension_numbers = #tpu.dot_dimension_numbers<[1], [0], [0], [1], [0, 0, 1, 1], [], []>} : vector<8x8xf32>, vector<8x128xf32>, vector<8x128xf32> -> vector<8x128xf32>
    %21 = arith.addf %17, %20 : vector<8x128xf32>
    %c0_18 = arith.constant 0 : index
    %c0_19 = arith.constant 0 : index
    %22 = vector.load %arg8[%c0_18, %c0_19] : memref<8x128xf32, #tpu.memory_space<vmem>>, vector<8x128xf32>
    tpu.vector_store %arg8[%c0_18, %c0_19], %21 {strides = array<i32>} : memref<8x128xf32, #tpu.memory_space<vmem>>, vector<8x128xf32>,
    return
  }
  func.func @transform_0(%arg0: i32) -> (i32, i32) {
    %c0_i32 = arith.constant 0 : i32
    %c0_i32_0 = arith.constant 0 : i32
    return %arg0, %c0_i32 : i32, i32
  }
  func.func @transform_1(%arg0: i32) -> (i32, i32) {
    %c0_i32 = arith.constant 0 : i32
    %c0_i32_0 = arith.constant 0 : i32
    %c0_i32_1 = arith.constant 0 : i32
    return %c0_i32, %c0_i32_0 : i32, i32
  }
  func.func @transform_2(%arg0: i32) -> (i32, i32) {
    %c0_i32 = arith.constant 0 : i32
    %c0_i32_0 = arith.constant 0 : i32
    %c0_i32_1 = arith.constant 0 : i32
    return %c0_i32, %c0_i32_0 : i32, i32
  }
  func.func @transform_3(%arg0: i32) -> (i32, i32) {
    %c0_i32 = arith.constant 0 : i32
    %c0_i32_0 = arith.constant 0 : i32
    return %arg0, %c0_i32 : i32, i32
  }
  func.func @transform_4(%arg0: i32) -> (i32, i32) {
    %c0_i32 = arith.constant 0 : i32
    %c0_i32_0 = arith.constant 0 : i32
    %c0_i32_1 = arith.constant 0 : i32
    return %c0_i32, %c0_i32_0 : i32, i32
  }
  func.func @transform_5(%arg0: i32) -> (i32, i32) {
    %c0_i32 = arith.constant 0 : i32
    %c0_i32_0 = arith.constant 0 : i32
    return %arg0, %c0_i32 : i32, i32
  }
  func.func @transform_6(%arg0: i32) -> (i32, i32) {
    %c0_i32 = arith.constant 0 : i32
    %c0_i32_0 = arith.constant 0 : i32
    %c0_i32_1 = arith.constant 0 : i32
    return %c0_i32, %c0_i32_0 : i32, i32
  }
  func.func @transform_7(%arg0: i32) -> (i32, i32) {
    %c0_i32 = arith.constant 0 : i32
    %c0_i32_0 = arith.constant 0 : i32
    return %arg0, %c0_i32 : i32, i32
  }
}

</mosaic_0001>

<llo_original>
// kernel: moe_forward.1
$region0: #{moe_forward.1}
  #allocation0 [shape = 'u32[]', space=smem, size = 0x4, offset = 0x4, fixed_abs, tag = 'smem constant byte address 0x4 - core index']
  #allocation1 [shape = 'u32[72,128]{1,0:T(1,128)}', space=vmem, size = 0x9000, scoped, tag = 'internal scratch']
  %s0 = inlined_call_operand.vmem [shape: f32[16,32], index: 0, kind: input, shape index: {}]
  %s1 = inlined_call_operand.vmem [shape: f32[32,512], index: 1, kind: input, shape index: {}]
  %s2 = inlined_call_operand.vmem [shape: f32[1,512], index: 2, kind: input, shape index: {}]
  %s3 = inlined_call_operand.vmem [shape: f32[16,512], index: 3, kind: input, shape index: {}]
  %s4 = inlined_call_operand.vmem [shape: f32[512,128], index: 4, kind: input, shape index: {}]
  %s5 = inlined_call_operand.vmem [shape: f32[16,8], index: 5, kind: input, shape index: {}]
  %s6 = inlined_call_operand.vmem [shape: f32[8,128], index: 6, kind: input, shape index: {}]
  %s7 = inlined_call_operand.vmem [shape: f32[16,128], index: 7, kind: output, shape index: {}]
  %s8 = sld [smem:[#allocation0]]
  $region61: #{moe_forward.1} parent=0
    _
  %s10 = ssub.s32 1, %s8
  %s11 = scalar_select 0, %s10, %s8
  loop: start=0, step=1, limit=4
  $region2: #{moe_forward.1} parent=0 // loop_pre_header
    _
  $region3: #{moe_forward.1} parent=0 // loop_header
    %s13 = sphi 0, %s17
    %p14 = scmp.ge.s32.totalorder %s13, 4
    %s23 = sphi 0, %s25
    %s26 = sphi 0, %s23
    %s27 = sphi 0, %s26
    %s43 = sphi 0, %s27
    %s47 = sphi 0, %s47
    %s49 = sphi 0, %s47
    %s50 = sphi 0, %s49
    %s64 = sphi 0, %s50
    %s68 = sphi 0, %s68
    %s70 = sphi 0, %s68
    %s71 = sphi 0, %s70
    %s85 = sphi 0, %s71
    %s91 = sphi 0, %s93
    %s94 = sphi 0, %s91
    %s95 = sphi 0, %s94
    %s111 = sphi 0, %s95
    %s115 = sphi 0, %s115
    %s117 = sphi 0, %s115
    %s118 = sphi 0, %s117
    %s132 = sphi 0, %s118
    %s138 = sphi 0, %s140
    %s141 = sphi 0, %s138
    %s142 = sphi 0, %s141
    %s158 = sphi 0, %s142
    %s162 = sphi 0, %s162
    %s164 = sphi 0, %s162
    %s165 = sphi 0, %s164
    %s179 = sphi 0, %s165
    %s185 = sphi 0, %s187
    %s188 = sphi 0, %s185
    %s189 = sphi 0, %s188
    %s205 = sphi 0, %s189
  $region4: #{moe_forward.1} parent=0 // loop_header_branch
    %16 = sbr.rel (%p14) target = $region8
  $region5: #{moe_forward.1} parent=0 // loop_body
    %s18 = ssub.s32 %s13, 1
    %s19 = ssub.s32 %s13, 2
    %s20 = sadd.s32 %s13, 1
    %s21 = ssub.s32 %s13, %s20
    %p22 = scmp.eq.s32.totalorder %s21, 0
    %s24 = sadd.s32 %s23, 1
    %s25 = scalar_select %p22, %s23, %s24
    %p28 = pneg %p22
    %p29 = scmp.eq.s32.totalorder %s13, 1
    %p30 = por %p28, %p29
    %p31 = scmp.ne.s32.totalorder %s23, %s26
    %p32 = scmp.eq.s32.totalorder %s13, 0
    %p33 = por %p31, %p32
    %p34 = scmp.ne.s32.totalorder %s23, %s26
    %p35 = scmp.eq.s32.totalorder %s18, 1
    %p36 = por %p34, %p35
    %p37 = scmp.ne.s32.totalorder %s26, %s27
    %p38 = scmp.eq.s32.totalorder %s18, 0
    %p39 = por %p37, %p38
    %p40 = scmp.ne.s32.totalorder %s26, %s27
    %p41 = scmp.eq.s32.totalorder %s19, 1
    %p42 = por %p40, %p41
    %p44 = scmp.ne.s32.totalorder %s27, %s43
    %p45 = scmp.eq.s32.totalorder %s19, 0
    %p46 = por %p44, %p45
    %s48 = sadd.s32 %s47, 1
    %p51 = scmp.eq.s32.totalorder %s13, 1
    %p52 = scmp.ne.s32.totalorder %s47, %s49
    %p53 = scmp.eq.s32.totalorder %s13, 0
    %p54 = por %p52, %p53
    %p55 = scmp.ne.s32.totalorder %s47, %s49
    %p56 = scmp.eq.s32.totalorder %s18, 1
    %p57 = por %p55, %p56
    %p58 = scmp.ne.s32.totalorder %s49, %s50
    %p59 = scmp.eq.s32.totalorder %s18, 0
    %p60 = por %p58, %p59
    %p61 = scmp.ne.s32.totalorder %s49, %s50
    %p62 = scmp.eq.s32.totalorder %s19, 1
    %p63 = por %p61, %p62
    %p65 = scmp.ne.s32.totalorder %s50, %s64
    %p66 = scmp.eq.s32.totalorder %s19, 0
    %p67 = por %p65, %p66
    %s69 = sadd.s32 %s68, 1
    %p72 = scmp.eq.s32.totalorder %s13, 1
    %p73 = scmp.ne.s32.totalorder %s68, %s70
    %p74 = scmp.eq.s32.totalorder %s13, 0
    %p75 = por %p73, %p74
    %p76 = scmp.ne.s32.totalorder %s68, %s70
    %p77 = scmp.eq.s32.totalorder %s18, 1
    %p78 = por %p76, %p77
    %p79 = scmp.ne.s32.totalorder %s70, %s71
    %p80 = scmp.eq.s32.totalorder %s18, 0
    %p81 = por %p79, %p80
    %p82 = scmp.ne.s32.totalorder %s70, %s71
    %p83 = scmp.eq.s32.totalorder %s19, 1
    %p84 = por %p82, %p83
    %p86 = scmp.ne.s32.totalorder %s71, %s85
    %p87 = scmp.eq.s32.totalorder %s19, 0
    %p88 = por %p86, %p87
    %s89 = ssub.s32 %s13, %s20
    %p90 = scmp.eq.s32.totalorder %s89, 0
    %s92 = sadd.s32 %s91, 1
    %s93 = scalar_select %p90, %s91, %s92
    %p96 = pneg %p90
    %p97 = scmp.eq.s32.totalorder %s13, 1
    %p98 = por %p96, %p97
    %p99 = scmp.ne.s32.totalorder %s91, %s94
    %p100 = scmp.eq.s32.totalorder %s13, 0
    %p101 = por %p99, %p100
    %p102 = scmp.ne.s32.totalorder %s91, %s94
    %p103 = scmp.eq.s32.totalorder %s18, 1
    %p104 = por %p102, %p103
    %p105 = scmp.ne.s32.totalorder %s94, %s95
    %p106 = scmp.eq.s32.totalorder %s18, 0
    %p107 = por %p105, %p106
    %p108 = scmp.ne.s32.totalorder %s94, %s95
    %p109 = scmp.eq.s32.totalorder %s19, 1
    %p110 = por %p108, %p109
    %p112 = scmp.ne.s32.totalorder %s95, %s111
    %p113 = scmp.eq.s32.totalorder %s19, 0
    %p114 = por %p112, %p113
    %s116 = sadd.s32 %s115, 1
    %p119 = scmp.eq.s32.totalorder %s13, 1
    %p120 = scmp.ne.s32.totalorder %s115, %s117
    %p121 = scmp.eq.s32.totalorder %s13, 0
    %p122 = por %p120, %p121
    %p123 = scmp.ne.s32.totalorder %s115, %s117
    %p124 = scmp.eq.s32.totalorder %s18, 1
    %p125 = por %p123, %p124
    %p126 = scmp.ne.s32.totalorder %s117, %s118
    %p127 = scmp.eq.s32.totalorder %s18, 0
    %p128 = por %p126, %p127
    %p129 = scmp.ne.s32.totalorder %s117, %s118
    %p130 = scmp.eq.s32.totalorder %s19, 1
    %p131 = por %p129, %p130
    %p133 = scmp.ne.s32.totalorder %s118, %s132
    %p134 = scmp.eq.s32.totalorder %s19, 0
    %p135 = por %p133, %p134
    %s136 = ssub.s32 %s13, %s20
    %p137 = scmp.eq.s32.totalorder %s136, 0
    %s139 = sadd.s32 %s138, 1
    %s140 = scalar_select %p137, %s138, %s139
    %p143 = pneg %p137
    %p144 = scmp.eq.s32.totalorder %s13, 1
    %p145 = por %p143, %p144
    %p146 = scmp.ne.s32.totalorder %s138, %s141
    %p147 = scmp.eq.s32.totalorder %s13, 0
    %p148 = por %p146, %p147
    %p149 = scmp.ne.s32.totalorder %s138, %s141
    %p150 = scmp.eq.s32.totalorder %s18, 1
    %p151 = por %p149, %p150
    %p152 = scmp.ne.s32.totalorder %s141, %s142
    %p153 = scmp.eq.s32.totalorder %s18, 0
    %p154 = por %p152, %p153
    %p155 = scmp.ne.s32.totalorder %s141, %s142
    %p156 = scmp.eq.s32.totalorder %s19, 1
    %p157 = por %p155, %p156
    %p159 = scmp.ne.s32.totalorder %s142, %s158
    %p160 = scmp.eq.s32.totalorder %s19, 0
    %p161 = por %p159, %p160
    %s163 = sadd.s32 %s162, 1
    %p166 = scmp.eq.s32.totalorder %s13, 1
    %p167 = scmp.ne.s32.totalorder %s162, %s164
    %p168 = scmp.eq.s32.totalorder %s13, 0
    %p169 = por %p167, %p168
    %p170 = scmp.ne.s32.totalorder %s162, %s164
    %p171 = scmp.eq.s32.totalorder %s18, 1
    %p172 = por %p170, %p171
    %p173 = scmp.ne.s32.totalorder %s164, %s165
    %p174 = scmp.eq.s32.totalorder %s18, 0
    %p175 = por %p173, %p174
    %p176 = scmp.ne.s32.totalorder %s164, %s165
    %p177 = scmp.eq.s32.totalorder %s19, 1
    %p178 = por %p176, %p177
    %p180 = scmp.ne.s32.totalorder %s165, %s179
    %p181 = scmp.eq.s32.totalorder %s19, 0
    %p182 = por %p180, %p181
    %s183 = ssub.s32 %s13, %s20
    %p184 = scmp.eq.s32.totalorder %s183, 0
    %s186 = sadd.s32 %s185, 1
    %s187 = scalar_select %p184, %s185, %s186
    %p190 = pneg %p184
    %p191 = scmp.eq.s32.totalorder %s13, 1
    %p192 = por %p190, %p191
    %p193 = scmp.ne.s32.totalorder %s185, %s188
    %p194 = scmp.eq.s32.totalorder %s13, 0
    %p195 = por %p193, %p194
    %p196 = scmp.ne.s32.totalorder %s185, %s188
    %p197 = scmp.eq.s32.totalorder %s18, 1
    %p198 = por %p196, %p197
    %p199 = scmp.ne.s32.totalorder %s188, %s189
    %p200 = scmp.eq.s32.totalorder %s18, 0
    %p201 = por %p199, %p200
    %p202 = scmp.ne.s32.totalorder %s188, %s189
    %p203 = scmp.eq.s32.totalorder %s19, 1
    %p204 = por %p202, %p203
    %p206 = scmp.ne.s32.totalorder %s189, %s205
    %p207 = scmp.eq.s32.totalorder %s19, 0
    %p208 = por %p206, %p207
    %p209 = scmp.le.s32.totalorder 1, %s13
    %p210 = scmp.lt.s32.totalorder %s13, 3
    %p211 = pnand %p209, %p210
    %p212 = pneg %p211
    // Predicated region
    $region9: #{moe_forward.1} parent=5 // pred_check
      _
    $region10: #{moe_forward.1} parent=5 // pred_check_branch
      %214 = sbr.rel (%p211) target = $region12
    $region11: #{moe_forward.1} parent=5 // pred_region
      %s215 = ssub.s32 %s13, 1
      // Predicated region
      $region13: #{moe_forward.1} parent=11 // pred_check
        %p216 = pneg %p60
      $region14: #{moe_forward.1} parent=11 // pred_check_branch
        %218 = sbr.rel (%p216) target = $region16
      $region15: #{moe_forward.1} parent=11 // pred_region
        _
      $region16: #{moe_forward.1} parent=11 // pred_fallthru
        _
      // Predicated region
      $region17: #{moe_forward.1} parent=11 // pred_check
        %p219 = pneg %p81
      $region18: #{moe_forward.1} parent=11 // pred_check_branch
        %221 = sbr.rel (%p219) target = $region20
      $region19: #{moe_forward.1} parent=11 // pred_region
        _
      $region20: #{moe_forward.1} parent=11 // pred_fallthru
        _
      // Predicated region
      $region21: #{moe_forward.1} parent=11 // pred_check
        %p222 = pneg %p128
      $region22: #{moe_forward.1} parent=11 // pred_check_branch
        %224 = sbr.rel (%p222) target = $region24
      $region23: #{moe_forward.1} parent=11 // pred_region
        _
      $region24: #{moe_forward.1} parent=11 // pred_fallthru
        _
      // Predicated region
      $region25: #{moe_forward.1} parent=11 // pred_check
        %p225 = pneg %p175
      $region26: #{moe_forward.1} parent=11 // pred_check_branch
        %227 = sbr.rel (%p225) target = $region28
      $region27: #{moe_forward.1} parent=11 // pred_region
        _
      $region28: #{moe_forward.1} parent=11 // pred_fallthru
        _
    $region12: #{moe_forward.1} parent=5 // pred_fallthru
      _
    %p228 = scmp.lt.s32.totalorder %s13, 2
    // Predicated region
    $region29: #{moe_forward.1} parent=5 // pred_check
      %p229 = pneg %p228
    $region30: #{moe_forward.1} parent=5 // pred_check_branch
      %231 = sbr.rel (%p229) target = $region32
    $region31: #{moe_forward.1} parent=5 // pred_region
      // Predicated region
      $region33: #{moe_forward.1} parent=31 // pred_check
        %p232 = pneg %p33
      $region34: #{moe_forward.1} parent=31 // pred_check_branch
        %234 = sbr.rel (%p232) target = $region36
      $region35: #{moe_forward.1} parent=31 // pred_region
        %p235 = scmp.lt.s32.totalorder %s13, 1
        %s236 = scalar_select %p235, %s13, 1
        %s237 = smul.addr %s236, 8
        %s238 = scalar_lea.vmem %s0, %s237
      $region36: #{moe_forward.1} parent=31 // pred_fallthru
        _
      // Predicated region
      $region37: #{moe_forward.1} parent=31 // pred_check
        %p239 = pneg %p101
      $region38: #{moe_forward.1} parent=31 // pred_check_branch
        %241 = sbr.rel (%p239) target = $region40
      $region39: #{moe_forward.1} parent=31 // pred_region
        %p242 = scmp.lt.s32.totalorder %s13, 1
        %s243 = scalar_select %p242, %s13, 1
        %s244 = smul.addr %s243, 4
        %s245 = smul.addr %s244, 8
        %s246 = scalar_lea.vmem %s3, %s245
      $region40: #{moe_forward.1} parent=31 // pred_fallthru
        _
      // Predicated region
      $region41: #{moe_forward.1} parent=31 // pred_check
        %p247 = pneg %p148
      $region42: #{moe_forward.1} parent=31 // pred_check_branch
        %249 = sbr.rel (%p247) target = $region44
      $region43: #{moe_forward.1} parent=31 // pred_region
        %p250 = scmp.lt.s32.totalorder %s13, 1
        %s251 = scalar_select %p250, %s13, 1
        %s252 = smul.addr %s251, 8
        %s253 = scalar_lea.vmem %s5, %s252
      $region44: #{moe_forward.1} parent=31 // pred_fallthru
        _
    $region32: #{moe_forward.1} parent=5 // pred_fallthru
      _
    %p254 = scmp.le.s32.totalorder 1, %s13
    %p255 = scmp.lt.s32.totalorder %s13, 3
    %p256 = pnand %p254, %p255
    %p257 = pneg %p256
    // Predicated region
    $region45: #{moe_forward.1} parent=5 // pred_check
      _
    $region46: #{moe_forward.1} parent=5 // pred_check_branch
      %259 = sbr.rel (%p256) target = $region48
    $region47: #{moe_forward.1} parent=5 // pred_region
      %s260 = ssub.s32 %s13, 1
      %p261 = scmp.lt.s32.totalorder %s18, 1
      %s262 = scalar_select %p261, %s18, 1
      %s263 = smul.addr %s262, 8
      %s264 = scalar_lea.vmem %s0, %s263
      %p265 = pneg %p39
      %p266 = pneg %p36
      %p267 = pneg %p60
      %p268 = pneg %p57
      %p269 = pneg %p81
      %p270 = pneg %p78
      %p271 = scmp.lt.s32.totalorder %s18, 1
      %s272 = scalar_select %p271, %s18, 1
      %s273 = smul.addr %s272, 4
      %s274 = smul.addr %s273, 8
      %s275 = scalar_lea.vmem %s3, %s274
      %p276 = pneg %p107
      %p277 = pneg %p104
      %p278 = pneg %p128
      %p279 = pneg %p125
      %p280 = scmp.lt.s32.totalorder %s18, 1
      %s281 = scalar_select %p280, %s18, 1
      %s282 = smul.addr %s281, 8
      %s283 = scalar_lea.vmem %s5, %s282
      %p284 = pneg %p154
      %p285 = pneg %p151
      %p286 = pneg %p175
      %p287 = pneg %p172
      %p288 = pneg %p201
      %p289 = pneg %p198
      %p290 = scmp.lt.s32.totalorder %s18, 1
      %s291 = scalar_select %p290, %s18, 1
      %s292 = smul.addr %s291, 8
      %s293 = scalar_lea.vmem %s7, %s292
      %p294 = scmp.lt.s32.totalorder %s18, 1
      %s295 = scalar_select %p294, %s18, 1
      %s296 = smul.addr %s295, 8
      %s297 = scalar_lea.vmem %s0, %s296
      %p298 = scmp.lt.s32.totalorder %s18, 1
      %s299 = scalar_select %p298, %s18, 1
      %s300 = smul.addr %s299, 4
      %s301 = smul.addr %s300, 8
      %s302 = scalar_lea.vmem %s3, %s301
      %p303 = scmp.lt.s32.totalorder %s18, 1
      %s304 = scalar_select %p303, %s18, 1
      %s305 = smul.addr %s304, 8
      %s306 = scalar_lea.vmem %s5, %s305
      %p307 = scmp.lt.s32.totalorder %s18, 1
      %s308 = scalar_select %p307, %s18, 1
      %s309 = smul.addr %s308, 8
      %s310 = scalar_lea.vmem %s7, %s309
      %v311 = vld [vmem:[%s297] sm:$0xff]
      %v312 = vld [vmem:[%s1] sm:$0xff]
      %v313 = vld [vmem:[%s1 + $0x8] sm:$0xff]
      %v314 = vld [vmem:[%s1 + $0x10] sm:$0xff]
      %v315 = vld [vmem:[%s1 + $0x18] sm:$0xff]
      %v316 = vld [vmem:[%s1 + $0x20] sm:$0xff]
      %v317 = vld [vmem:[%s1 + $0x28] sm:$0xff]
      %v318 = vld [vmem:[%s1 + $0x30] sm:$0xff]
      %v319 = vld [vmem:[%s1 + $0x38] sm:$0xff]
      %v320 = vld [vmem:[%s1 + $0x40] sm:$0xff]
      %v321 = vld [vmem:[%s1 + $0x48] sm:$0xff]
      %v322 = vld [vmem:[%s1 + $0x50] sm:$0xff]
      %v323 = vld [vmem:[%s1 + $0x58] sm:$0xff]
      %v324 = vld [vmem:[%s1 + $0x60] sm:$0xff]
      %v325 = vld [vmem:[%s1 + $0x68] sm:$0xff]
      %v326 = vld [vmem:[%s1 + $0x70] sm:$0xff]
      %v327 = vld [vmem:[%s1 + $0x78] sm:$0xff]
      %v328 = vld [vmem:[%s2] sm:$0xf]
      %v330 = vperm.slane %v328, 0
      %v331 = vperm.slane %v328, 1
      %v332 = vperm.slane %v328, 2
      %v333 = vperm.slane %v328, 3
      %vm338 = vcmask 261120
      %v340 = vsel %vm338, %v311, 0
      %342 = vmatpush.msra.mxu0 0.0
      %343 = vmatpush.msra.mxu0 0.0
      %344 = vmatpush.msra.mxu0 0.0
      %345 = vmatpush.msra.mxu0 0.0
      %346 = vmatpush.msra.mxu0 0.0
      %347 = vmatpush.msra.mxu0 0.0
      %348 = vmatpush.msra.mxu0 0.0
      %349 = vmatpush.msra.mxu0 0.0
      %350 = vmatpush.msra.mxu0 0.0
      %351 = vmatpush.msra.mxu0 0.0
      %352 = vmatpush.msra.mxu0 0.0
      %353 = vmatpush.msra.mxu0 0.0
      %354 = vmatpush.msra.mxu0 %v324
      %355 = vmatpush.msra.mxu0 %v320
      %356 = vmatpush.msra.mxu0 %v316
      %357 = vmatpush.msra.mxu0 %v312
      %358 = vmatmul.f32.gmra.mxu0 %v340
      %v359 = vpop.f32.mrf.mxu0
      %v360 = vadd.f32 %v330, %v359
      %361 = vdwg.mxu0
      %362 = vmatpush.msra.mxu0 0.0
      %363 = vmatpush.msra.mxu0 0.0
      %364 = vmatpush.msra.mxu0 0.0
      %365 = vmatpush.msra.mxu0 0.0
      %366 = vmatpush.msra.mxu0 0.0
      %367 = vmatpush.msra.mxu0 0.0
      %368 = vmatpush.msra.mxu0 0.0
      %369 = vmatpush.msra.mxu0 0.0
      %370 = vmatpush.msra.mxu0 0.0
      %371 = vmatpush.msra.mxu0 0.0
      %372 = vmatpush.msra.mxu0 0.0
      %373 = vmatpush.msra.mxu0 0.0
      %374 = vmatpush.msra.mxu0 %v325
      %375 = vmatpush.msra.mxu0 %v321
      %376 = vmatpush.msra.mxu0 %v317
      %377 = vmatpush.msra.mxu0 %v313
      %378 = vmatmul.f32.gmra.mxu0 %v340
      %v379 = vpop.f32.mrf.mxu0
      %v380 = vadd.f32 %v331, %v379
      %381 = vdwg.mxu0
      %382 = vmatpush.msra.mxu0 0.0
      %383 = vmatpush.msra.mxu0 0.0
      %384 = vmatpush.msra.mxu0 0.0
      %385 = vmatpush.msra.mxu0 0.0
      %386 = vmatpush.msra.mxu0 0.0
      %387 = vmatpush.msra.mxu0 0.0
      %388 = vmatpush.msra.mxu0 0.0
      %389 = vmatpush.msra.mxu0 0.0
      %390 = vmatpush.msra.mxu0 0.0
      %391 = vmatpush.msra.mxu0 0.0
      %392 = vmatpush.msra.mxu0 0.0
      %393 = vmatpush.msra.mxu0 0.0
      %394 = vmatpush.msra.mxu0 %v326
      %395 = vmatpush.msra.mxu0 %v322
      %396 = vmatpush.msra.mxu0 %v318
      %397 = vmatpush.msra.mxu0 %v314
      %398 = vmatmul.f32.gmra.mxu0 %v340
      %v399 = vpop.f32.mrf.mxu0
      %v400 = vadd.f32 %v332, %v399
      %401 = vdwg.mxu0
      %402 = vmatpush.msra.mxu0 0.0
      %403 = vmatpush.msra.mxu0 0.0
      %404 = vmatpush.msra.mxu0 0.0
      %405 = vmatpush.msra.mxu0 0.0
      %406 = vmatpush.msra.mxu0 0.0
      %407 = vmatpush.msra.mxu0 0.0
      %408 = vmatpush.msra.mxu0 0.0
      %409 = vmatpush.msra.mxu0 0.0
      %410 = vmatpush.msra.mxu0 0.0
      %411 = vmatpush.msra.mxu0 0.0
      %412 = vmatpush.msra.mxu0 0.0
      %413 = vmatpush.msra.mxu0 0.0
      %414 = vmatpush.msra.mxu0 %v327
      %415 = vmatpush.msra.mxu0 %v323
      %416 = vmatpush.msra.mxu0 %v319
      %417 = vmatpush.msra.mxu0 %v315
      %418 = vmatmul.f32.gmra.mxu0 %v340
      %v419 = vpop.f32.mrf.mxu0
      %v420 = vadd.f32 %v333, %v419
      %421 = vdwg.mxu0
      %v422 = vmul.f32 %v360, 0.5
      %v423 = vmul.f32 %v380, 0.5
      %v424 = vmul.f32 %v400, 0.5
      %v425 = vmul.f32 %v420, 0.5
      %v426 = vmul.f32 %v360, 0.70710677
      %v427 = vmul.f32 %v380, 0.70710677
      %v428 = vmul.f32 %v400, 0.70710677
      %v429 = vmul.f32 %v420, 0.70710677
      %v430 = vmul.f32 %v426, %v426
      %v431 = vmin.f32 16.0, %v430
      %v432 = vmul.f32 %v431, 2.1237322e-06
      %v433 = vadd.f32 %v432, 0.00028619796
      %v434 = vmul.f32 %v431, %v433
      %v435 = vadd.f32 %v434, 0.0036580483
      %v436 = vmul.f32 %v431, %v435
      %v437 = vadd.f32 %v436, 0.05243302
      %v438 = vmul.f32 %v431, %v437
      %v439 = vadd.f32 %v438, 0.18741608
      %v440 = vmul.f32 %v431, %v439
      %v441 = vadd.f32 %v440, 1.1283791
      %v442 = vmul.f32 %v426, %v441
      %v443 = vmul.f32 %v431, 3.8918573e-05
      %v444 = vadd.f32 %v443, 0.001143296
      %v445 = vmul.f32 %v431, %v444
      %v446 = vadd.f32 %v445, 0.014752088
      %v447 = vmul.f32 %v431, %v446
      %v448 = vadd.f32 %v447, 0.112945676
      %v449 = vmul.f32 %v431, %v448
      %v450 = vadd.f32 %v449, 0.4994258
      %v451 = vmul.f32 %v431, %v450
      %v452 = vadd.f32 %v451, 1.0
      %v453 = vrcp.pop %v452
      %v454 = vmul.f32 %v452, %v453
      %v455 = vsub.f32 1.0, %v454
      %v456 = vmul.f32 %v453, %v455
      %v457 = vadd.f32 %v453, %v456
      %vm458 = vweird.f32 %v452
      %vm459 = vweird.f32 %v453
      %vm460 = vmor %vm458, %vm459
      %v461 = vsel %vm460, %v453, %v457
      %v462 = vand.u32 2147483647, %v452
      %vm463 = vcmp.eq.f32.partialorder %v462, 8.507059e+37
      %v464 = vand.u32 %v452, 2147483648
      %v465 = vor.u32 1.1754944e-38, %v464
      %v466 = vsel %vm463, %v465, %v461
      %v467 = vmul.f32 %v442, %v466
      %v468 = vmin.f32 %v467, 1.0
      %v469 = vmax.f32 %v468, -1.0
      %v470 = vmul.f32 %v427, %v427
      %v471 = vmin.f32 16.0, %v470
      %v472 = vmul.f32 %v471, 2.1237322e-06
      %v473 = vadd.f32 %v472, 0.00028619796
      %v474 = vmul.f32 %v471, %v473
      %v475 = vadd.f32 %v474, 0.0036580483
      %v476 = vmul.f32 %v471, %v475
      %v477 = vadd.f32 %v476, 0.05243302
      %v478 = vmul.f32 %v471, %v477
      %v479 = vadd.f32 %v478, 0.18741608
      %v480 = vmul.f32 %v471, %v479
      %v481 = vadd.f32 %v480, 1.1283791
      %v482 = vmul.f32 %v427, %v481
      %v483 = vmul.f32 %v471, 3.8918573e-05
      %v484 = vadd.f32 %v483, 0.001143296
      %v485 = vmul.f32 %v471, %v484
      %v486 = vadd.f32 %v485, 0.014752088
      %v487 = vmul.f32 %v471, %v486
      %v488 = vadd.f32 %v487, 0.112945676
      %v489 = vmul.f32 %v471, %v488
      %v490 = vadd.f32 %v489, 0.4994258
      %v491 = vmul.f32 %v471, %v490
      %v492 = vadd.f32 %v491, 1.0
      %v493 = vrcp.pop %v492
      %v494 = vmul.f32 %v492, %v493
      %v495 = vsub.f32 1.0, %v494
      %v496 = vmul.f32 %v493, %v495
      %v497 = vadd.f32 %v493, %v496
      %vm498 = vweird.f32 %v492
      %vm499 = vweird.f32 %v493
      %vm500 = vmor %vm498, %vm499
      %v501 = vsel %vm500, %v493, %v497
      %v502 = vand.u32 2147483647, %v492
      %vm503 = vcmp.eq.f32.partialorder %v502, 8.507059e+37
      %v504 = vand.u32 %v492, 2147483648
      %v505 = vor.u32 1.1754944e-38, %v504
      %v506 = vsel %vm503, %v505, %v501
      %v507 = vmul.f32 %v482, %v506
      %v508 = vmin.f32 %v507, 1.0
      %v509 = vmax.f32 %v508, -1.0
      %v510 = vmul.f32 %v428, %v428
      %v511 = vmin.f32 16.0, %v510
      %v512 = vmul.f32 %v511, 2.1237322e-06
      %v513 = vadd.f32 %v512, 0.00028619796
      %v514 = vmul.f32 %v511, %v513
      %v515 = vadd.f32 %v514, 0.0036580483
      %v516 = vmul.f32 %v511, %v515
      %v517 = vadd.f32 %v516, 0.05243302
      %v518 = vmul.f32 %v511, %v517
      %v519 = vadd.f32 %v518, 0.18741608
      %v520 = vmul.f32 %v511, %v519
      %v521 = vadd.f32 %v520, 1.1283791
      %v522 = vmul.f32 %v428, %v521
      %v523 = vmul.f32 %v511, 3.8918573e-05
      %v524 = vadd.f32 %v523, 0.001143296
      %v525 = vmul.f32 %v511, %v524
      %v526 = vadd.f32 %v525, 0.014752088
      %v527 = vmul.f32 %v511, %v526
      %v528 = vadd.f32 %v527, 0.112945676
      %v529 = vmul.f32 %v511, %v528
      %v530 = vadd.f32 %v529, 0.4994258
      %v531 = vmul.f32 %v511, %v530
      %v532 = vadd.f32 %v531, 1.0
      %v533 = vrcp.pop %v532
      %v534 = vmul.f32 %v532, %v533
      %v535 = vsub.f32 1.0, %v534
      %v536 = vmul.f32 %v533, %v535
      %v537 = vadd.f32 %v533, %v536
      %vm538 = vweird.f32 %v532
      %vm539 = vweird.f32 %v533
      %vm540 = vmor %vm538, %vm539
      %v541 = vsel %vm540, %v533, %v537
      %v542 = vand.u32 2147483647, %v532
      %vm543 = vcmp.eq.f32.partialorder %v542, 8.507059e+37
      %v544 = vand.u32 %v532, 2147483648
      %v545 = vor.u32 1.1754944e-38, %v544
      %v546 = vsel %vm543, %v545, %v541
      %v547 = vmul.f32 %v522, %v546
      %v548 = vmin.f32 %v547, 1.0
      %v549 = vmax.f32 %v548, -1.0
      %v550 = vmul.f32 %v429, %v429
      %v551 = vmin.f32 16.0, %v550
      %v552 = vmul.f32 %v551, 2.1237322e-06
      %v553 = vadd.f32 %v552, 0.00028619796
      %v554 = vmul.f32 %v551, %v553
      %v555 = vadd.f32 %v554, 0.0036580483
      %v556 = vmul.f32 %v551, %v555
      %v557 = vadd.f32 %v556, 0.05243302
      %v558 = vmul.f32 %v551, %v557
      %v559 = vadd.f32 %v558, 0.18741608
      %v560 = vmul.f32 %v551, %v559
      %v561 = vadd.f32 %v560, 1.1283791
      %v562 = vmul.f32 %v429, %v561
      %v563 = vmul.f32 %v551, 3.8918573e-05
      %v564 = vadd.f32 %v563, 0.001143296
      %v565 = vmul.f32 %v551, %v564
      %v566 = vadd.f32 %v565, 0.014752088
      %v567 = vmul.f32 %v551, %v566
      %v568 = vadd.f32 %v567, 0.112945676
      %v569 = vmul.f32 %v551, %v568
      %v570 = vadd.f32 %v569, 0.4994258
      %v571 = vmul.f32 %v551, %v570
      %v572 = vadd.f32 %v571, 1.0
      %v573 = vrcp.pop %v572
      %v574 = vmul.f32 %v572, %v573
      %v575 = vsub.f32 1.0, %v574
      %v576 = vmul.f32 %v573, %v575
      %v577 = vadd.f32 %v573, %v576
      %vm578 = vweird.f32 %v572
      %vm579 = vweird.f32 %v573
      %vm580 = vmor %vm578, %vm579
      %v581 = vsel %vm580, %v573, %v577
      %v582 = vand.u32 2147483647, %v572
      %vm583 = vcmp.eq.f32.partialorder %v582, 8.507059e+37
      %v584 = vand.u32 %v572, 2147483648
      %v585 = vor.u32 1.1754944e-38, %v584
      %v586 = vsel %vm583, %v585, %v581
      %v587 = vmul.f32 %v562, %v586
      %v588 = vmin.f32 %v587, 1.0
      %v589 = vmax.f32 %v588, -1.0
      %v590 = vadd.f32 %v469, 1.0
      %v591 = vadd.f32 %v509, 1.0
      %v592 = vadd.f32 %v549, 1.0
      %v593 = vadd.f32 %v589, 1.0
      %v594 = vmul.f32 %v422, %v590
      %v595 = vmul.f32 %v423, %v591
      %v596 = vmul.f32 %v424, %v592
      %v597 = vmul.f32 %v425, %v593
      %v598 = vld [vmem:[%s302] sm:$0xff]
      %v599 = vld [vmem:[%s302 + $0x8] sm:$0xff]
      %v600 = vld [vmem:[%s302 + $0x10] sm:$0xff]
      %v601 = vld [vmem:[%s302 + $0x18] sm:$0xff]
      %v602 = vmul.f32 %v594, %v598
      %v603 = vmul.f32 %v595, %v599
      %v604 = vmul.f32 %v596, %v600
      %v605 = vmul.f32 %v597, %v601
      %v606 = vld [vmem:[%s4] sm:$0xff]
      %v607 = vld [vmem:[%s4 + $0x8] sm:$0xff]
      %v608 = vld [vmem:[%s4 + $0x10] sm:$0xff]
      %v609 = vld [vmem:[%s4 + $0x18] sm:$0xff]
      %v610 = vld [vmem:[%s4 + $0x20] sm:$0xff]
      %v611 = vld [vmem:[%s4 + $0x28] sm:$0xff]
      %v612 = vld [vmem:[%s4 + $0x30] sm:$0xff]
      %v613 = vld [vmem:[%s4 + $0x38] sm:$0xff]
      %v614 = vld [vmem:[%s4 + $0x40] sm:$0xff]
      %v615 = vld [vmem:[%s4 + $0x48] sm:$0xff]
      %v616 = vld [vmem:[%s4 + $0x50] sm:$0xff]
      %v617 = vld [vmem:[%s4 + $0x58] sm:$0xff]
      %v618 = vld [vmem:[%s4 + $0x60] sm:$0xff]
      %v619 = vld [vmem:[%s4 + $0x68] sm:$0xff]
      %v620 = vld [vmem:[%s4 + $0x70] sm:$0xff]
      %v621 = vld [vmem:[%s4 + $0x78] sm:$0xff]
      %v622 = vld [vmem:[%s4 + $0x80] sm:$0xff]
      %v623 = vld [vmem:[%s4 + $0x88] sm:$0xff]
      %v624 = vld [vmem:[%s4 + $0x90] sm:$0xff]
      %v625 = vld [vmem:[%s4 + $0x98] sm:$0xff]
      %v626 = vld [vmem:[%s4 + $0xa0] sm:$0xff]
      %v627 = vld [vmem:[%s4 + $0xa8] sm:$0xff]
      %v628 = vld [vmem:[%s4 + $0xb0] sm:$0xff]
      %v629 = vld [vmem:[%s4 + $0xb8] sm:$0xff]
      %v630 = vld [vmem:[%s4 + $0xc0] sm:$0xff]
      %v631 = vld [vmem:[%s4 + $0xc8] sm:$0xff]
      %v632 = vld [vmem:[%s4 + $0xd0] sm:$0xff]
      %v633 = vld [vmem:[%s4 + $0xd8] sm:$0xff]
      %v634 = vld [vmem:[%s4 + $0xe0] sm:$0xff]
      %v635 = vld [vmem:[%s4 + $0xe8] sm:$0xff]
      %v636 = vld [vmem:[%s4 + $0xf0] sm:$0xff]
      %v637 = vld [vmem:[%s4 + $0xf8] sm:$0xff]
      %v638 = vld [vmem:[%s4 + $0x100] sm:$0xff]
      %v639 = vld [vmem:[%s4 + $0x108] sm:$0xff]
      %v640 = vld [vmem:[%s4 + $0x110] sm:$0xff]
      %v641 = vld [vmem:[%s4 + $0x118] sm:$0xff]
      %v642 = vld [vmem:[%s4 + $0x120] sm:$0xff]
      %v643 = vld [vmem:[%s4 + $0x128] sm:$0xff]
      %v644 = vld [vmem:[%s4 + $0x130] sm:$0xff]
      %v645 = vld [vmem:[%s4 + $0x138] sm:$0xff]
      %v646 = vld [vmem:[%s4 + $0x140] sm:$0xff]
      %v647 = vld [vmem:[%s4 + $0x148] sm:$0xff]
      %v648 = vld [vmem:[%s4 + $0x150] sm:$0xff]
      %v649 = vld [vmem:[%s4 + $0x158] sm:$0xff]
      %v650 = vld [vmem:[%s4 + $0x160] sm:$0xff]
      %v651 = vld [vmem:[%s4 + $0x168] sm:$0xff]
      %v652 = vld [vmem:[%s4 + $0x170] sm:$0xff]
      %v653 = vld [vmem:[%s4 + $0x178] sm:$0xff]
      %v654 = vld [vmem:[%s4 + $0x180] sm:$0xff]
      %v655 = vld [vmem:[%s4 + $0x188] sm:$0xff]
      %v656 = vld [vmem:[%s4 + $0x190] sm:$0xff]
      %v657 = vld [vmem:[%s4 + $0x198] sm:$0xff]
      %v658 = vld [vmem:[%s4 + $0x1a0] sm:$0xff]
      %v659 = vld [vmem:[%s4 + $0x1a8] sm:$0xff]
      %v660 = vld [vmem:[%s4 + $0x1b0] sm:$0xff]
      %v661 = vld [vmem:[%s4 + $0x1b8] sm:$0xff]
      %v662 = vld [vmem:[%s4 + $0x1c0] sm:$0xff]
      %v663 = vld [vmem:[%s4 + $0x1c8] sm:$0xff]
      %v664 = vld [vmem:[%s4 + $0x1d0] sm:$0xff]
      %v665 = vld [vmem:[%s4 + $0x1d8] sm:$0xff]
      %v666 = vld [vmem:[%s4 + $0x1e0] sm:$0xff]
      %v667 = vld [vmem:[%s4 + $0x1e8] sm:$0xff]
      %v668 = vld [vmem:[%s4 + $0x1f0] sm:$0xff]
      %v669 = vld [vmem:[%s4 + $0x1f8] sm:$0xff]
      %v670 = vld [vmem:[%s306] sm:$0xff]
      %v671 = vld [vmem:[%s6] sm:$0xff]
      %vm672 = vcmask 64512
      %v674 = vsel %vm672, %v670, 0
      %676 = vmatpush.msra.mxu0 0.0
      %677 = vmatpush.msra.mxu0 0.0
      %678 = vmatpush.msra.mxu0 0.0
      %679 = vmatpush.msra.mxu0 0.0
      %680 = vmatpush.msra.mxu0 0.0
      %681 = vmatpush.msra.mxu0 0.0
      %682 = vmatpush.msra.mxu0 0.0
      %683 = vmatpush.msra.mxu0 0.0
      %684 = vmatpush.msra.mxu0 0.0
      %685 = vmatpush.msra.mxu0 0.0
      %686 = vmatpush.msra.mxu0 0.0
      %687 = vmatpush.msra.mxu0 0.0
      %688 = vmatpush.msra.mxu0 0.0
      %689 = vmatpush.msra.mxu0 0.0
      %690 = vmatpush.msra.mxu0 0.0
      %691 = vmatpush.msra.mxu0 %v671
      %692 = vmatmul.f32.gmra.mxu0 %v674
      %v693 = vpop.f32.mrf.mxu0
      %v694 = vadd.f32 0.0, %v693
      %695 = vdwg.mxu0
      %696 = vmatpush.msra.mxu0 %v621
      %697 = vmatpush.msra.mxu0 %v620
      %698 = vmatpush.msra.mxu0 %v619
      %699 = vmatpush.msra.mxu0 %v618
      %700 = vmatpush.msra.mxu0 %v617
      %701 = vmatpush.msra.mxu0 %v616
      %702 = vmatpush.msra.mxu0 %v615
      %703 = vmatpush.msra.mxu0 %v614
      %704 = vmatpush.msra.mxu0 %v613
      %705 = vmatpush.msra.mxu0 %v612
      %706 = vmatpush.msra.mxu0 %v611
      %707 = vmatpush.msra.mxu0 %v610
      %708 = vmatpush.msra.mxu0 %v609
      %709 = vmatpush.msra.mxu0 %v608
      %710 = vmatpush.msra.mxu0 %v607
      %711 = vmatpush.msra.mxu0 %v606
      %712 = vmatmul.f32.gmra.mxu0 %v602
      %v713 = vpop.f32.mrf.mxu0
      %v714 = vadd.f32 %v694, %v713
      %715 = vdwg.mxu0
      %716 = vmatpush.msra.mxu0 %v637
      %717 = vmatpush.msra.mxu0 %v636
      %718 = vmatpush.msra.mxu0 %v635
      %719 = vmatpush.msra.mxu0 %v634
      %720 = vmatpush.msra.mxu0 %v633
      %721 = vmatpush.msra.mxu0 %v632
      %722 = vmatpush.msra.mxu0 %v631
      %723 = vmatpush.msra.mxu0 %v630
      %724 = vmatpush.msra.mxu0 %v629
      %725 = vmatpush.msra.mxu0 %v628
      %726 = vmatpush.msra.mxu0 %v627
      %727 = vmatpush.msra.mxu0 %v626
      %728 = vmatpush.msra.mxu0 %v625
      %729 = vmatpush.msra.mxu0 %v624
      %730 = vmatpush.msra.mxu0 %v623
      %731 = vmatpush.msra.mxu0 %v622
      %732 = vmatmul.f32.gmra.mxu0 %v603
      %v733 = vpop.f32.mrf.mxu0
      %v734 = vadd.f32 %v714, %v733
      %735 = vdwg.mxu0
      %736 = vmatpush.msra.mxu0 %v653
      %737 = vmatpush.msra.mxu0 %v652
      %738 = vmatpush.msra.mxu0 %v651
      %739 = vmatpush.msra.mxu0 %v650
      %740 = vmatpush.msra.mxu0 %v649
      %741 = vmatpush.msra.mxu0 %v648
      %742 = vmatpush.msra.mxu0 %v647
      %743 = vmatpush.msra.mxu0 %v646
      %744 = vmatpush.msra.mxu0 %v645
      %745 = vmatpush.msra.mxu0 %v644
      %746 = vmatpush.msra.mxu0 %v643
      %747 = vmatpush.msra.mxu0 %v642
      %748 = vmatpush.msra.mxu0 %v641
      %749 = vmatpush.msra.mxu0 %v640
      %750 = vmatpush.msra.mxu0 %v639
      %751 = vmatpush.msra.mxu0 %v638
      %752 = vmatmul.f32.gmra.mxu0 %v604
      %v753 = vpop.f32.mrf.mxu0
      %v754 = vadd.f32 %v734, %v753
      %755 = vdwg.mxu0
      %756 = vmatpush.msra.mxu0 %v669
      %757 = vmatpush.msra.mxu0 %v668
      %758 = vmatpush.msra.mxu0 %v667
      %759 = vmatpush.msra.mxu0 %v666
      %760 = vmatpush.msra.mxu0 %v665
      %761 = vmatpush.msra.mxu0 %v664
      %762 = vmatpush.msra.mxu0 %v663
      %763 = vmatpush.msra.mxu0 %v662
      %764 = vmatpush.msra.mxu0 %v661
      %765 = vmatpush.msra.mxu0 %v660
      %766 = vmatpush.msra.mxu0 %v659
      %767 = vmatpush.msra.mxu0 %v658
      %768 = vmatpush.msra.mxu0 %v657
      %769 = vmatpush.msra.mxu0 %v656
      %770 = vmatpush.msra.mxu0 %v655
      %771 = vmatpush.msra.mxu0 %v654
      %772 = vmatmul.f32.gmra.mxu0 %v605
      %v773 = vpop.f32.mrf.mxu0
      %v774 = vadd.f32 %v754, %v773
      %775 = vdwg.mxu0
      %776 = vst [vmem:[%s310] sm:$0xff] %v774
      %p777 = scmp.lt.s32.totalorder %s18, 1
      %s778 = scalar_select %p777, %s18, 1
      %s779 = smul.addr %s778, 8
      %s780 = scalar_lea.vmem %s7, %s779
      // Predicated region
      $region49: #{moe_forward.1} parent=47 // pred_check
        %p781 = pneg %p198
      $region50: #{moe_forward.1} parent=47 // pred_check_branch
        %783 = sbr.rel (%p781) target = $region52
      $region51: #{moe_forward.1} parent=47 // pred_region
        _
      $region52: #{moe_forward.1} parent=47 // pred_fallthru
        _
    $region48: #{moe_forward.1} parent=5 // pred_fallthru
      _
    %p784 = scmp.le.s32.totalorder 2, %s13
    // Predicated region
    $region53: #{moe_forward.1} parent=5 // pred_check
      %p785 = pneg %p784
    $region54: #{moe_forward.1} parent=5 // pred_check_branch
      %787 = sbr.rel (%p785) target = $region56
    $region55: #{moe_forward.1} parent=5 // pred_region
      %s788 = ssub.s32 %s13, 2
      // Predicated region
      $region57: #{moe_forward.1} parent=55 // pred_check
        %p789 = pneg %p204
      $region58: #{moe_forward.1} parent=55 // pred_check_branch
        %791 = sbr.rel (%p789) target = $region60
      $region59: #{moe_forward.1} parent=55 // pred_region
        %p792 = scmp.lt.s32.totalorder %s19, 1
        %s793 = scalar_select %p792, %s19, 1
        %s794 = smul.addr %s793, 8
        %s795 = scalar_lea.vmem %s7, %s794
      $region60: #{moe_forward.1} parent=55 // pred_fallthru
        _
    $region56: #{moe_forward.1} parent=5 // pred_fallthru
      _
  $region6: #{moe_forward.1} parent=0 // loop_footer
    %s17 = sadd.s32 1, %s13
  $region7: #{moe_forward.1} parent=0 // loop_footer_branch
    %12 = sbr.rel target = $region3
  $region8: #{moe_forward.1} parent=0 // loop_exit
    _

</llo_original>
